<compile_context>
chip_gen: v7x
topology: tpu7x:2x2x1
jax: 0.10.0
libtpu: 0.0.40
codegen_flags: <defaults>
</compile_context>

<pallas_src>
import functools

import jax
import jax.numpy as jnp
from jax import lax
from jax.experimental import pallas as pl
from jax.experimental.pallas import tpu as pltpu

LANE = 128
SUBLANE = 8


def _pack_rows(dtype):
    """Rows per packed sublane tile: f32->8, bf16/fp16->16, (u)int8/bool->32."""
    return SUBLANE * max(1, 4 // jnp.dtype(dtype).itemsize)


def _elem_loss(x, y):
    """Stable BCE-with-logits, elementwise (matches BCEWithLogitsLoss, no pos_weight)."""
    x = x.astype(jnp.float32)
    y = y.astype(jnp.float32)
    neg_abs = -jnp.abs(x)
    return jnp.maximum(x, 0.0) - x * y + jnp.log(1.0 + jnp.exp(neg_abs))


def _bce_kernel(pred_ref, label_ref, out_ref, *, tile_rows, sub_rows,
                steps_per_chunk, valid_rows):
    """grid = (chunk, step). `chunk` is the parallel axis (megacore-shardable);
    `step` walks the row tiles of that chunk.  Partial sums accumulate
    lane-parallel into the resident (8,128) f32 output block (its index_map is
    constant across `step`)."""
    c = pl.program_id(0)
    s = pl.program_id(1)

    @pl.when(s == 0)
    def _():
        out_ref[...] = jnp.zeros_like(out_ref)

    row0 = (c * steps_per_chunk + s) * tile_rows
    is_full = row0 + tile_rows <= valid_rows
    n_sub = tile_rows // sub_rows          # static python int

    @pl.when(is_full)
    def _():
        # Full tile: stream sub-blocks so intermediates stay in vregs instead
        # of materializing a (tile_rows, 128) f32 temp in VMEM.
        def body(k, carry):
            rs = pl.multiple_of(k * sub_rows, sub_rows)
            loss = _elem_loss(pred_ref[pl.ds(rs, sub_rows), :],
                              label_ref[pl.ds(rs, sub_rows), :])
            # Reduce only over the vreg-stacking axis: pure VPU adds.
            out_ref[...] += loss.reshape(sub_rows // SUBLANE, SUBLANE,
                                         LANE).sum(axis=0)
            return carry

        if n_sub == 1:
            body(0, 0)
        else:
            lax.fori_loop(0, n_sub, body, 0, unroll=True)

    @pl.when(jnp.logical_not(is_full))
    def _():
        # Ragged last tile (or a fully-padded tile when the chunked grid
        # over-covers): mask rows >= valid_rows.  Only ever taken once per
        # chunk, so the extra iota/compare/select is off the hot path.
        loss = _elem_loss(pred_ref[...], label_ref[...])
        rid = lax.broadcasted_iota(jnp.int32, (tile_rows, LANE), 0) + row0
        loss = jnp.where(rid < valid_rows, loss, 0.0)
        out_ref[...] += loss.reshape(tile_rows // SUBLANE, SUBLANE,
                                     LANE).sum(axis=0)


@functools.partial(jax.jit, static_argnames=("max_tile_rows", "num_chunks"))
def bce_with_logits_mean(img_pred, label, *, max_tile_rows=2048, num_chunks=1):
    """Pallas TPU implementation of BCEWithLogitsLoss(reduction='mean').

    num_chunks: keep 1 on single-TensorCore chips (v5e/v6e); set 2 on v7x so
    the leading "parallel" grid axis can shard across both TensorCores.
    """
    # TODO(synk): pos_weight branch (class_freq_path / np.load) not implemented;
    # the module default weight=None is what we implement.  Only reduction='mean'.
    assert img_pred.shape == label.shape
    n_elem = img_pred.size

    p = img_pred.reshape(-1)
    l = label.reshape(-1)

    rem = n_elem % LANE                 # sub-lane-row remainder (< 128 elems)
    rows_raw = n_elem // LANE

    tail_sum = jnp.zeros((), jnp.float32)
    if rem:
        tail_sum = jnp.sum(_elem_loss(p[n_elem - rem:], l[n_elem - rem:]))

    pack = max(_pack_rows(p.dtype), _pack_rows(l.dtype))

    if rows_raw < pack:
        # TODO(synk): input smaller than one packed (pack,128) tile -> pure
        # jnp fallback; the Pallas path needs at least one packed row tile.
        bulk_sum = jnp.sum(_elem_loss(p[:rows_raw * LANE], l[:rows_raw * LANE]))
        return (bulk_sum + tail_sum) / jnp.float32(n_elem)

    if rem == 0:
        p2 = p.reshape(rows_raw, LANE)   # free (contiguous) reshape, no copy
        l2 = l.reshape(rows_raw, LANE)
    else:
        # TODO(synk): when numel % 128 != 0 the prefix slice materializes a
        # copy of the bulk before the kernel (rare for segmentation tensors).
        p2 = p[:rows_raw * LANE].reshape(rows_raw, LANE)
        l2 = l[:rows_raw * LANE].reshape(rows_raw, LANE)

    # --- static tile / grid sizing --------------------------------------
    cap = max(pack, (max_tile_rows // pack) * pack)
    tile_rows = min(cap, (rows_raw // pack) * pack)     # multiple of `pack`
    sub_rows = 256 if tile_rows % 256 == 0 else tile_rows

    steps_total = -(-rows_raw // tile_rows)             # cdiv
    n_ch = max(1, min(num_chunks, steps_total))
    spc = -(-steps_total // n_ch)
    last_blk = steps_total - 1

    if n_ch * spc == steps_total:
        in_idx = lambda c, s: (c * spc + s, 0)
    else:
        # Clamp fully-out-of-range steps of the last chunk onto the last valid
        # block; their contribution is zeroed by the in-kernel row mask.
        in_idx = lambda c, s: (jnp.minimum(c * spc + s, last_blk), 0)

    in_spec = pl.BlockSpec((tile_rows, LANE), in_idx)
    out_spec = pl.BlockSpec((SUBLANE, LANE), lambda c, s: (c, 0))

    kernel = functools.partial(
        _bce_kernel, tile_rows=tile_rows, sub_rows=sub_rows,
        steps_per_chunk=spc, valid_rows=rows_raw)

    in_bytes = p2.dtype.itemsize + l2.dtype.itemsize
    cost = pl.CostEstimate(
        flops=5 * rows_raw * LANE,
        transcendentals=2 * rows_raw * LANE,
        bytes_accessed=rows_raw * LANE * in_bytes + n_ch * SUBLANE * LANE * 4)

    partials = pl.pallas_call(
        kernel,
        out_shape=jax.ShapeDtypeStruct((n_ch * SUBLANE, LANE), jnp.float32),
        grid_spec=pltpu.PrefetchScalarGridSpec(
            num_scalar_prefetch=0,
            grid=(n_ch, spc),
            in_specs=[in_spec, in_spec],
            out_specs=out_spec,
        ),
        compiler_params=pltpu.CompilerParams(
            dimension_semantics=("parallel", "arbitrary")),
        cost_estimate=cost,
    )(p2, l2)

    # Tiny final reduction over per-chunk lane-parallel partials + mean divide.
    return (jnp.sum(partials) + tail_sum) / jnp.float32(n_elem)


def _reference(img_pred, label):
    return jnp.mean(_elem_loss(img_pred, label))


if __name__ == "__main__":
    key = jax.random.PRNGKey(0)
    k1, k2, k3, k4 = jax.random.split(key, 4)

    # NCHW logits and soft labels, small shapes.
    x = jax.random.normal(k1, (2, 4, 16, 16), dtype=jnp.float32)
    y = jax.random.uniform(k2, (2, 4, 16, 16), dtype=jnp.float32)
    loss = jax.block_until_ready(bce_with_logits_mean(x, y))
    ref = _reference(x, y)
    assert jnp.allclose(loss, ref, rtol=1e-5, atol=1e-6), (loss, ref)

    # Ragged shape: exercises the jnp tail (<128 elems) and the in-kernel
    # masked last tile (rows not a multiple of tile_rows).
    x2 = jax.random.normal(k3, (2, 4, 10, 30), dtype=jnp.float32)
    y2 = jax.random.uniform(k4, (2, 4, 10, 30), dtype=jnp.float32)
    loss2 = jax.block_until_ready(bce_with_logits_mean(x2, y2))
    ref2 = _reference(x2, y2)
    assert jnp.allclose(loss2, ref2, rtol=1e-5, atol=1e-6), (loss2, ref2)

    print("KERNEL_OK")
</pallas_src>

<mosaic_0001>
module attributes {stable_mosaic.version = 11 : i64} {
  func.func @_bce_kernel(%arg0: i32, %arg1: i32, %arg2: memref<16x128xf32, #tpu.memory_space<vmem>>, %arg3: memref<16x128xf32, #tpu.memory_space<vmem>>, %arg4: memref<8x128xf32, #tpu.memory_space<vmem>>) attributes {dimension_semantics = [#tpu.dimension_semantics<parallel>, #tpu.dimension_semantics<arbitrary>], iteration_bounds = array<i64: 1, 1>, scalar_prefetch = 0 : i64, scratch_operands = 0 : i64, tpu.core_type = #tpu.core_type<tc>, window_params = [{transform_indices = @transform_0, window_bounds = array<i64: 16, 128>}, {transform_indices = @transform_1, window_bounds = array<i64: 16, 128>}, {transform_indices = @transform_2, window_bounds = array<i64: 8, 128>}]} {
    %c0_i32 = arith.constant 0 : i32
    %0 = arith.cmpi eq, %arg1, %c0_i32 : i32
    %1 = arith.extui %0 : i1 to i32
    %c0_i32_0 = arith.constant 0 : i32
    %2 = arith.cmpi ne, %1, %c0_i32_0 : i32
    scf.if %2 {
      %cst = arith.constant 0.000000e+00 : f32
      %13 = vector.broadcast %cst : f32 to vector<8x128xf32>
      %c0 = arith.constant 0 : index
      %c0_5 = arith.constant 0 : index
      %14 = vector.load %arg4[%c0, %c0_5] : memref<8x128xf32, #tpu.memory_space<vmem>>, vector<8x128xf32>
      tpu.vector_store %arg4[%c0, %c0_5], %13 {strides = array<i32>} : memref<8x128xf32, #tpu.memory_space<vmem>>, vector<8x128xf32>,
    } else {
    }
    %c1_i32 = arith.constant 1 : i32
    %3 = arith.muli %arg0, %c1_i32 : i32
    %4 = arith.addi %3, %arg1 : i32
    %c16_i32 = arith.constant 16 : i32
    %5 = arith.muli %4, %c16_i32 : i32
    %c16_i32_1 = arith.constant 16 : i32
    %6 = arith.addi %5, %c16_i32_1 : i32
    %c16_i32_2 = arith.constant 16 : i32
    %7 = arith.cmpi sle, %6, %c16_i32_2 : i32
    %8 = arith.extui %7 : i1 to i32
    %c0_i32_3 = arith.constant 0 : i32
    %9 = arith.cmpi ne, %8, %c0_i32_3 : i32
    scf.if %9 {
      %c0_i32_5 = arith.constant 0 : i32
      %13 = tpu.assume_multiple %c0_i32_5, 16 : i32
      %14 = arith.index_cast %13 : i32 to index
      %c0 = arith.constant 0 : index
      %15 = vector.load %arg2[%14, %c0] : memref<16x128xf32, #tpu.memory_space<vmem>>, vector<16x128xf32>
      %16 = arith.index_cast %13 : i32 to index
      %c0_6 = arith.constant 0 : index
      %17 = vector.load %arg3[%16, %c0_6] : memref<16x128xf32, #tpu.memory_space<vmem>>, vector<16x128xf32>
      %18 = math.absf %15 : vector<16x128xf32>
      %cst = arith.constant 0.000000e+00 : f32
      %19 = vector.broadcast %cst : f32 to vector<16x128xf32>
      %20 = arith.subf %19, %18 : vector<16x128xf32>
      %cst_7 = arith.constant 0.000000e+00 : f32
      %21 = vector.broadcast %cst_7 : f32 to vector<16x128xf32>
      %22 = arith.maximumf %15, %21 : vector<16x128xf32>
      %23 = arith.mulf %15, %17 : vector<16x128xf32>
      %24 = arith.subf %22, %23 : vector<16x128xf32>
      %25 = math.exp %20 : vector<16x128xf32>
      %cst_8 = arith.constant 1.000000e+00 : f32
      %26 = vector.broadcast %cst_8 : f32 to vector<16x128xf32>
      %27 = arith.addf %26, %25 : vector<16x128xf32>
      %28 = math.log %27 : vector<16x128xf32>
      %29 = arith.addf %24, %28 : vector<16x128xf32>
      %c0_9 = arith.constant 0 : index
      %c0_10 = arith.constant 0 : index
      %30 = vector.load %arg4[%c0_9, %c0_10] : memref<8x128xf32, #tpu.memory_space<vmem>>, vector<8x128xf32>
      %31 = vector.shape_cast %29 : vector<16x128xf32> to vector<2x8x128xf32>
      %cst_11 = arith.constant dense<0.000000e+00> : vector<8x128xf32>
      %32 = vector.multi_reduction <add>, %31, %cst_11 [0] : vector<2x8x128xf32> to vector<8x128xf32>
      %33 = arith.addf %30, %32 : vector<8x128xf32>
      %c0_12 = arith.constant 0 : index
      %c0_13 = arith.constant 0 : index
      %34 = vector.load %arg4[%c0_12, %c0_13] : memref<8x128xf32, #tpu.memory_space<vmem>>, vector<8x128xf32>
      tpu.vector_store %arg4[%c0_12, %c0_13], %33 {strides = array<i32>} : memref<8x128xf32, #tpu.memory_space<vmem>>, vector<8x128xf32>,
    } else {
    }
    %true = arith.constant true
    %10 = arith.xori %7, %true : i1
    %11 = arith.extui %10 : i1 to i32
    %c0_i32_4 = arith.constant 0 : i32
    %12 = arith.cmpi ne, %11, %c0_i32_4 : i32
    scf.if %12 {
      %c0 = arith.constant 0 : index
      %c0_5 = arith.constant 0 : index
      %13 = vector.load %arg2[%c0, %c0_5] : memref<16x128xf32, #tpu.memory_space<vmem>>, vector<16x128xf32>
      %c0_6 = arith.constant 0 : index
      %c0_7 = arith.constant 0 : index
      %14 = vector.load %arg3[%c0_6, %c0_7] : memref<16x128xf32, #tpu.memory_space<vmem>>, vector<16x128xf32>
      %15 = math.absf %13 : vector<16x128xf32>
      %cst = arith.constant 0.000000e+00 : f32
      %16 = vector.broadcast %cst : f32 to vector<16x128xf32>
      %17 = arith.subf %16, %15 : vector<16x128xf32>
      %cst_8 = arith.constant 0.000000e+00 : f32
      %18 = vector.broadcast %cst_8 : f32 to vector<16x128xf32>
      %19 = arith.maximumf %13, %18 : vector<16x128xf32>
      %20 = arith.mulf %13, %14 : vector<16x128xf32>
      %21 = arith.subf %19, %20 : vector<16x128xf32>
      %22 = math.exp %17 : vector<16x128xf32>
      %cst_9 = arith.constant 1.000000e+00 : f32
      %23 = vector.broadcast %cst_9 : f32 to vector<16x128xf32>
      %24 = arith.addf %23, %22 : vector<16x128xf32>
      %25 = math.log %24 : vector<16x128xf32>
      %26 = arith.addf %21, %25 : vector<16x128xf32>
      %27 = tpu.iota {dimensions = array<i32: 0>} : vector<16x128xi32>
      %28 = vector.broadcast %5 : i32 to vector<16x128xi32>
      %29 = arith.addi %27, %28 : vector<16x128xi32>
      %c16_i32_10 = arith.constant 16 : i32
      %30 = vector.broadcast %c16_i32_10 : i32 to vector<16x128xi32>
      %31 = arith.cmpi slt, %29, %30 : vector<16x128xi32>
      %cst_11 = arith.constant 0.000000e+00 : f32
      %32 = vector.broadcast %cst_11 : f32 to vector<16x128xf32>
      %33 = arith.select %31, %26, %32 : vector<16x128xi1>, vector<16x128xf32>
      %c0_12 = arith.constant 0 : index
      %c0_13 = arith.constant 0 : index
      %34 = vector.load %arg4[%c0_12, %c0_13] : memref<8x128xf32, #tpu.memory_space<vmem>>, vector<8x128xf32>
      %35 = vector.shape_cast %33 : vector<16x128xf32> to vector<2x8x128xf32>
      %cst_14 = arith.constant dense<0.000000e+00> : vector<8x128xf32>
      %36 = vector.multi_reduction <add>, %35, %cst_14 [0] : vector<2x8x128xf32> to vector<8x128xf32>
      %37 = arith.addf %34, %36 : vector<8x128xf32>
      %c0_15 = arith.constant 0 : index
      %c0_16 = arith.constant 0 : index
      %38 = vector.load %arg4[%c0_15, %c0_16] : memref<8x128xf32, #tpu.memory_space<vmem>>, vector<8x128xf32>
      tpu.vector_store %arg4[%c0_15, %c0_16], %37 {strides = array<i32>} : memref<8x128xf32, #tpu.memory_space<vmem>>, vector<8x128xf32>,
    } else {
    }
    return
  }
  func.func @transform_0(%arg0: i32, %arg1: i32) -> (i32, i32) {
    %c1_i32 = arith.constant 1 : i32
    %0 = arith.muli %arg0, %c1_i32 : i32
    %1 = arith.addi %0, %arg1 : i32
    %c0_i32 = arith.constant 0 : i32
    %c0_i32_0 = arith.constant 0 : i32
    return %1, %c0_i32 : i32, i32
  }
  func.func @transform_1(%arg0: i32, %arg1: i32) -> (i32, i32) {
    %c1_i32 = arith.constant 1 : i32
    %0 = arith.muli %arg0, %c1_i32 : i32
    %1 = arith.addi %0, %arg1 : i32
    %c0_i32 = arith.constant 0 : i32
    %c0_i32_0 = arith.constant 0 : i32
    return %1, %c0_i32 : i32, i32
  }
  func.func @transform_2(%arg0: i32, %arg1: i32) -> (i32, i32) {
    %c0_i32 = arith.constant 0 : i32
    %c0_i32_0 = arith.constant 0 : i32
    return %arg0, %c0_i32 : i32, i32
  }
}

</mosaic_0001>

<llo_original>
// kernel: bce_with_logits_mean.1
$region0: #{bce_with_logits_mean.1}
  #allocation0 [shape = 'u32[]', space=smem, size = 0x4, offset = 0x4, fixed_abs, tag = 'smem constant byte address 0x4 - core index']
  #allocation1 [shape = 'u32[144,128]{1,0:T(1,128)}', space=vmem, size = 0x12000, scoped, tag = 'internal scratch']
  %s0 = inlined_call_operand.vmem [shape: f32[16,128], index: 0, kind: input, shape index: {}]
  %s1 = inlined_call_operand.vmem [shape: f32[16,128], index: 1, kind: input, shape index: {}]
  %s2 = inlined_call_operand.vmem [shape: f32[8,128], index: 2, kind: output, shape index: {}]
  %s3 = sld [smem:[#allocation0]]
  $region30: #{bce_with_logits_mean.1} parent=0
    _
  %s5 = ssub.s32 1, %s3
  %s6 = scalar_select 0, %s5, %s3
  // Predicated region
  $region2: #{bce_with_logits_mean.1} parent=0 // pred_check
    _
  $region3: #{bce_with_logits_mean.1} parent=0 // pred_check_branch
    %8 = sbr.rel (0) target = $region5
  $region4: #{bce_with_logits_mean.1} parent=0 // pred_region
    %s9 = sadd.s32 0, 0
    %s10 = smul.u32 2, %s9
    %p11 = scmp.lt.s32.totalorder %s10, 1
    %s12 = scalar_select %p11, %s10, 1
    %s13 = smul.addr %s12, 8
    %s14 = scalar_lea.vmem %s0, %s13
    %s15 = sadd.s32 0, 0
    %s16 = smul.u32 2, %s15
  $region5: #{bce_with_logits_mean.1} parent=0 // pred_fallthru
    _
  // Predicated region
  $region6: #{bce_with_logits_mean.1} parent=0 // pred_check
    _
  $region7: #{bce_with_logits_mean.1} parent=0 // pred_check_branch
    %18 = sbr.rel (0) target = $region9
  $region8: #{bce_with_logits_mean.1} parent=0 // pred_region
    %s19 = sadd.s32 0, 0
    %s20 = smul.u32 2, %s19
    %p21 = scmp.lt.s32.totalorder %s20, 1
    %s22 = scalar_select %p21, %s20, 1
    %s23 = smul.addr %s22, 8
    %s24 = scalar_lea.vmem %s1, %s23
    %s25 = sadd.s32 0, 0
    %s26 = smul.u32 2, %s25
  $region9: #{bce_with_logits_mean.1} parent=0 // pred_fallthru
    _
  %s27 = sadd.s32 0, 0
  %s28 = smul.u32 2, %s27
  %p29 = scmp.lt.s32.totalorder %s28, 1
  %s30 = scalar_select %p29, %s28, 1
  %s31 = smul.addr %s30, 8
  %s32 = scalar_lea.vmem %s0, %s31
  %s33 = sadd.s32 0, 0
  %s34 = smul.u32 2, %s33
  %p35 = scmp.lt.s32.totalorder %s34, 1
  %s36 = scalar_select %p35, %s34, 1
  %s37 = smul.addr %s36, 8
  %s38 = scalar_lea.vmem %s1, %s37
  %s39 = sadd.s32 0, 0
  %s40 = smul.u32 2, %s39
  %p41 = scmp.lt.s32.totalorder %s40, 1
  %s42 = scalar_select %p41, %s40, 1
  %s43 = smul.addr %s42, 8
  %s44 = scalar_lea.vmem %s0, %s43
  %s45 = sadd.s32 0, 0
  %s46 = smul.u32 2, %s45
  %s47 = sadd.s32 0, 0
  %s48 = smul.u32 2, %s47
  %p49 = scmp.lt.s32.totalorder %s48, 1
  %s50 = scalar_select %p49, %s48, 1
  %s51 = smul.addr %s50, 8
  %s52 = scalar_lea.vmem %s1, %s51
  %s53 = sadd.s32 0, 0
  %s54 = smul.u32 2, %s53
  %p55 = scmp.eq.s32.totalorder 0, 0
  // Predicated region
  $region10: #{bce_with_logits_mean.1} parent=0 // pred_check
    %p56 = pneg %p55
  $region11: #{bce_with_logits_mean.1} parent=0 // pred_check_branch
    %58 = sbr.rel (%p56) target = $region13
  $region12: #{bce_with_logits_mean.1} parent=0 // pred_region
    %59 = vst [vmem:[%s2] sm:$0xff] 0.0
  $region13: #{bce_with_logits_mean.1} parent=0 // pred_fallthru
    _
  %s60 = sadd.s32 0, 0
  %s61 = smul.u32 %s60, 16
  %s62 = sadd.s32 %s61, 16
  %p63 = scmp.le.s32.totalorder %s62, 16
  // Predicated region
  $region14: #{bce_with_logits_mean.1} parent=0 // pred_check
    %p64 = pneg %p63
  $region15: #{bce_with_logits_mean.1} parent=0 // pred_check_branch
    %66 = sbr.rel (%p64) target = $region17
  $region16: #{bce_with_logits_mean.1} parent=0 // pred_region
    %v67 = vld [vmem:[%s44] sm:$0xff]
    %v68 = vld [vmem:[%s44 + $0x8] sm:$0xff]
    %v69 = vld [vmem:[%s52] sm:$0xff]
    %v70 = vld [vmem:[%s52 + $0x8] sm:$0xff]
    %v71 = vand.u32 2147483647, %v67
    %v72 = vand.u32 2147483647, %v68
    %v73 = vsub.f32 0.0, %v71
    %v74 = vsub.f32 0.0, %v72
    %v75 = vmax.f32 %v67, 0.0
    %v76 = vmax.f32 %v68, 0.0
    %v77 = vmul.f32 %v67, %v69
    %v78 = vmul.f32 %v68, %v70
    %v79 = vsub.f32 %v75, %v77
    %v80 = vsub.f32 %v76, %v78
    %v81 = vmul.f32 %v73, 1.442695
    %v82 = vpow.pop %v81
    %v83 = vmul.f32 %v74, 1.442695
    %v84 = vpow.pop %v83
    %v85 = vadd.f32 %v82, 1.0
    %v86 = vadd.f32 %v84, 1.0
    %v87 = vlog2.pop %v85
    %v88 = vmul.f32 %v87, 0.6931472
    %v89 = vlog2.pop %v86
    %v90 = vmul.f32 %v89, 0.6931472
    %v91 = vadd.f32 %v79, %v88
    %v92 = vadd.f32 %v80, %v90
    %v93 = vld [vmem:[%s2] sm:$0xff]
    %v94 = vadd.f32 %v91, %v92
    %v95 = vadd.f32 %v93, %v94
    %96 = vst [vmem:[%s2] sm:$0xff] %v95
  $region17: #{bce_with_logits_mean.1} parent=0 // pred_fallthru
    _
  %p97 = scmp.gt.s32.totalorder %s62, 16
  // Predicated region
  $region18: #{bce_with_logits_mean.1} parent=0 // pred_check
    %p98 = pneg %p97
  $region19: #{bce_with_logits_mean.1} parent=0 // pred_check_branch
    %100 = sbr.rel (%p98) target = $region21
  $region20: #{bce_with_logits_mean.1} parent=0 // pred_region
    %v101 = vld [vmem:[%s44] sm:$0xff]
    %v102 = vld [vmem:[%s44 + $0x8] sm:$0xff]
    %v103 = vld [vmem:[%s52] sm:$0xff]
    %v104 = vld [vmem:[%s52 + $0x8] sm:$0xff]
    %v105 = vand.u32 2147483647, %v101
    %v106 = vand.u32 2147483647, %v102
    %v107 = vsub.f32 0.0, %v105
    %v108 = vsub.f32 0.0, %v106
    %v109 = vmax.f32 %v101, 0.0
    %v110 = vmax.f32 %v102, 0.0
    %v111 = vmul.f32 %v101, %v103
    %v112 = vmul.f32 %v102, %v104
    %v113 = vsub.f32 %v109, %v111
    %v114 = vsub.f32 %v110, %v112
    %v115 = vmul.f32 %v107, 1.442695
    %v116 = vpow.pop %v115
    %v117 = vmul.f32 %v108, 1.442695
    %v118 = vpow.pop %v117
    %v119 = vadd.f32 %v116, 1.0
    %v120 = vadd.f32 %v118, 1.0
    %v121 = vlog2.pop %v119
    %v122 = vmul.f32 %v121, 0.6931472
    %v123 = vlog2.pop %v120
    %v124 = vmul.f32 %v123, 0.6931472
    %v125 = vadd.f32 %v113, %v122
    %v126 = vadd.f32 %v114, %v124
    %v127 = vlaneseq
    %v128 = vshrl.u32 %v127, 7
    %v129 = vadd.s32 %v128, 8
    %v130 = vstv %s61
    %v131 = vadd.s32 %v128, %v130
    %v132 = vadd.s32 %v129, %v130
    %vm133 = vcmp.lt.s32.totalorder %v131, 16
    %vm134 = vcmp.lt.s32.totalorder %v132, 16
    %v135 = vsel %vm133, %v125, 0.0
    %v136 = vsel %vm134, %v126, 0.0
    %v137 = vld [vmem:[%s2] sm:$0xff]
    %v138 = vadd.f32 %v135, %v136
    %v139 = vadd.f32 %v137, %v138
    %140 = vst [vmem:[%s2] sm:$0xff] %v139
  $region21: #{bce_with_logits_mean.1} parent=0 // pred_fallthru
    _
  // Predicated region
  $region22: #{bce_with_logits_mean.1} parent=0 // pred_check
    _
  $region23: #{bce_with_logits_mean.1} parent=0 // pred_check_branch
    %142 = sbr.rel (0) target = $region25
  $region24: #{bce_with_logits_mean.1} parent=0 // pred_region
    _
  $region25: #{bce_with_logits_mean.1} parent=0 // pred_fallthru
    _
  // Predicated region
  $region26: #{bce_with_logits_mean.1} parent=0 // pred_check
    _
  $region27: #{bce_with_logits_mean.1} parent=0 // pred_check_branch
    %144 = sbr.rel (0) target = $region29
  $region28: #{bce_with_logits_mean.1} parent=0 // pred_region
    _
  $region29: #{bce_with_logits_mean.1} parent=0 // pred_fallthru
    _

</llo_original>
